<compile_context>
chip_gen: v6e
topology: v6e:2x2x1
jax: 0.10.0
libtpu: 0.0.40
codegen_flags: <defaults>
</compile_context>

<pallas_src>
import functools

import jax
import jax.numpy as jnp
from jax import lax
from jax.experimental import pallas as pl
from jax.experimental.pallas import tpu as pltpu


# --------------------------------------------------------------------------- #
# Helpers
# --------------------------------------------------------------------------- #
def _round_up(x, m):
    return (x + m - 1) // m * m


def _cdiv(a, b):
    return (a + b - 1) // b


def _halve(v, mult, floor):
    """Roughly halve v while keeping it a multiple of `mult` and >= floor."""
    return max(floor, _round_up((v + 1) // 2, mult))


def _sublane_multiple(dtype):
    # Second-to-last block dim requirement: 8 (f32) / 16 (bf16) / 32 (int8/fp8).
    return max(8, 32 // jnp.dtype(dtype).itemsize)


def _vmem_capacity_bytes():
    """Per-TensorCore VMEM capacity; conservative fallback is v7x (64 MiB)."""
    try:
        info = pltpu.get_tpu_info()
        for attr in ("vmem_capacity_bytes", "vmem_bytes", "vmem_size_bytes"):
            v = getattr(info, attr, None)
            if v:
                return int(v)
    except Exception:
        pass
    return 64 * 1024 * 1024


# --------------------------------------------------------------------------- #
# Kernels
# --------------------------------------------------------------------------- #
def _linear_bias_kernel(x_ref, w_ref, b_ref, o_ref):
    # Single K tile: no reduction loop, no scratch accumulator.
    acc = jnp.dot(x_ref[...], w_ref[...], preferred_element_type=jnp.float32)
    o_ref[...] = (acc + b_ref[...].astype(jnp.float32)).astype(o_ref.dtype)


def _linear_nobias_kernel(x_ref, w_ref, o_ref):
    acc = jnp.dot(x_ref[...], w_ref[...], preferred_element_type=jnp.float32)
    o_ref[...] = acc.astype(o_ref.dtype)


def _linear_acc_bias_kernel(x_ref, w_ref, b_ref, o_ref, acc_ref):
    # Grid = (M tiles, N tiles, K tiles); K is the sequential reduction axis.
    k = pl.program_id(2)

    @pl.when(k == 0)
    def _():
        acc_ref[...] = jnp.zeros_like(acc_ref)

    acc_ref[...] += jnp.dot(x_ref[...], w_ref[...],
                            preferred_element_type=jnp.float32)

    @pl.when(k == pl.num_programs(2) - 1)
    def _():
        o_ref[...] = (acc_ref[...] + b_ref[...].astype(jnp.float32)).astype(o_ref.dtype)


def _linear_acc_nobias_kernel(x_ref, w_ref, o_ref, acc_ref):
    k = pl.program_id(2)

    @pl.when(k == 0)
    def _():
        acc_ref[...] = jnp.zeros_like(acc_ref)

    acc_ref[...] += jnp.dot(x_ref[...], w_ref[...],
                            preferred_element_type=jnp.float32)

    @pl.when(k == pl.num_programs(2) - 1)
    def _():
        o_ref[...] = acc_ref[...].astype(o_ref.dtype)


# --------------------------------------------------------------------------- #
# Jitted forward (weight already transposed to (Kp, Np) and padded)
# --------------------------------------------------------------------------- #
@functools.partial(jax.jit, static_argnames=("out_features", "tm_cap", "tn", "tk"))
def _linear_forward(x, wt, b2d, *, out_features, tm_cap, tn, tk):
    K = x.shape[-1]
    lead = x.shape[:-1]
    x2d = x.reshape(-1, K)
    M = x2d.shape[0]
    Kp, Np = wt.shape
    out_dtype = jnp.result_type(x.dtype, wt.dtype)

    assert tn % 128 == 0 and tk % 128 == 0
    assert Np % tn == 0 and Kp % tk == 0

    # Sublane multiple for the M (second-to-last) tile dim, per dtype.
    sm = max(_sublane_multiple(x.dtype), _sublane_multiple(out_dtype))
    tm = min(tm_cap, _round_up(M, sm))

    n_tiles = Np // tn
    m_tiles = _cdiv(M, tm)
    # v7x has 2 TensorCores: make sure the "parallel" grid has >= 2 blocks
    # whenever the problem can be split along M.
    if m_tiles * n_tiles < 2 and M > sm:
        tm = _round_up(_cdiv(M, 2), sm)
        m_tiles = _cdiv(M, tm)

    Mp = _round_up(M, tm)
    if Mp != M or Kp != K:
        # Zero K-padding contributes 0 to the dot; padded M rows sliced below.
        x2d = jnp.pad(x2d, ((0, Mp - M), (0, Kp - K)))

    m_tiles = Mp // tm
    k_tiles = Kp // tk
    has_bias = b2d is not None

    dx = x2d.dtype.itemsize
    dw = wt.dtype.itemsize
    db = b2d.dtype.itemsize if has_bias else 0
    do = jnp.dtype(out_dtype).itemsize

    cost = pl.CostEstimate(
        flops=2 * Mp * Np * Kp,
        bytes_accessed=(Mp * Kp * dx + Kp * Np * dw + Mp * Np * do
                        + (Np * db if has_bias else 0)),
        transcendentals=0,
    )

    # Actual buffer accounting: double-buffered x/W(/bias) inputs, double-
    # buffered output, plus the f32 accumulator when K is tiled.
    vmem_need = (2 * (tm * tk * dx + tk * tn * dw) + 2 * tm * tn * do
                 + (2 * tn * db if has_bias else 0)
                 + (tm * tn * 4 if k_tiles > 1 else 0))
    cap = _vmem_capacity_bytes()
    vmem_limit = int(min(max(vmem_need + (4 << 20), 16 << 20), int(0.85 * cap)))

    if k_tiles == 1:
        grid = (m_tiles, n_tiles)
        dims = ("parallel", "parallel")
        x_spec = pl.BlockSpec((tm, tk), lambda i, j: (i, 0))
        w_spec = pl.BlockSpec((tk, tn), lambda i, j: (0, j))
        o_spec = pl.BlockSpec((tm, tn), lambda i, j: (i, j))
        scratch = []
        if has_bias:
            kern = _linear_bias_kernel
            in_specs = [x_spec, w_spec, pl.BlockSpec((1, tn), lambda i, j: (0, j))]
            args = (x2d, wt, b2d)
        else:
            kern = _linear_nobias_kernel
            in_specs = [x_spec, w_spec]
            args = (x2d, wt)
    else:
        grid = (m_tiles, n_tiles, k_tiles)
        dims = ("parallel", "parallel", "arbitrary")
        x_spec = pl.BlockSpec((tm, tk), lambda i, j, k: (i, k))
        w_spec = pl.BlockSpec((tk, tn), lambda i, j, k: (k, j))
        o_spec = pl.BlockSpec((tm, tn), lambda i, j, k: (i, j))
        scratch = [pltpu.VMEM((tm, tn), jnp.float32)]
        if has_bias:
            kern = _linear_acc_bias_kernel
            in_specs = [x_spec, w_spec, pl.BlockSpec((1, tn), lambda i, j, k: (0, j))]
            args = (x2d, wt, b2d)
        else:
            kern = _linear_acc_nobias_kernel
            in_specs = [x_spec, w_spec]
            args = (x2d, wt)

    out2d = pl.pallas_call(
        kern,
        out_shape=jax.ShapeDtypeStruct((Mp, Np), out_dtype),
        grid_spec=pltpu.PrefetchScalarGridSpec(
            num_scalar_prefetch=0,
            grid=grid,
            in_specs=in_specs,
            out_specs=o_spec,
            scratch_shapes=scratch,
        ),
        compiler_params=pltpu.CompilerParams(
            dimension_semantics=dims,
            vmem_limit_bytes=vmem_limit,
        ),
        cost_estimate=cost,
    )(*args)

    if Mp != M or Np != out_features:
        out2d = out2d[:M, :out_features]
    return out2d.reshape(*lead, out_features)


# --------------------------------------------------------------------------- #
# Module-equivalent wrapper: weight transpose/pad + tile selection done ONCE
# --------------------------------------------------------------------------- #
class RandomPruneLinear:
    """Forward-pass equivalent of the RoCoFT `random_prune` module.

    forward(x) = x @ W.T + b
    """

    def __init__(self, weight, bias=None, *, tm_cap=None, tn=None, tk=None):
        weight = jnp.asarray(weight)
        self.out_features, self.in_features = weight.shape
        N, K = self.out_features, self.in_features

        dw = jnp.dtype(weight.dtype).itemsize
        db = jnp.dtype(jnp.asarray(bias).dtype).itemsize if bias is not None else 0
        dx = 4  # worst-case activation / output itemsize for budgeting
        do = 4

        budget = int(0.70 * _vmem_capacity_bytes())

        # Tile defaults: lane/MXU-friendly, sized for the per-generation VMEM.
        # Prefer a single full-K tile (no accumulator round-trips); shrink the
        # N tile first, then M, then K, until the footprint fits the budget.
        tm_budget = _round_up(tm_cap, 32) if tm_cap else 512
        tn = tn or min(1024, _round_up(N, 128))
        tk = tk or _round_up(K, 128)

        def need(tm_, tn_, tk_):
            n = 2 * (tm_ * tk_ * dx + tk_ * tn_ * dw) + 2 * tm_ * tn_ * do
            if bias is not None:
                n += 2 * tn_ * db
            n += tm_ * tn_ * 4  # f32 accumulator (conservative)
            return n

        while need(tm_budget, tn, tk) > budget:
            if tn > 512:
                tn = _halve(tn, 128, 128)
            elif tm_budget > 256:
                tm_budget = _halve(tm_budget, 32, 32)
            elif tk > 1024:
                tk = _halve(tk, 128, 128)
            elif tn > 128:
                tn = _halve(tn, 128, 128)
            elif tm_budget > 32:
                tm_budget = _halve(tm_budget, 32, 32)
            elif tk > 128:
                tk = _halve(tk, 128, 128)
            else:
                break

        self.tm_cap, self.tn, self.tk = tm_budget, tn, tk

        # One-time (hoisted out of the per-call path): transpose W to (K, N)
        # so the kernel contracts (tm,tk)x(tk,tn) with no per-tile transpose,
        # and pad it to tile multiples so no HBM re-pad happens per forward.
        Kp, Np = _round_up(K, tk), _round_up(N, tn)
        wt = weight.T
        if (Kp, Np) != (K, N):
            wt = jnp.pad(wt, ((0, Kp - K), (0, Np - N)))
        self.wt = wt

        if bias is not None:
            b2d = jnp.asarray(bias).reshape(1, N)
            if Np != N:
                b2d = jnp.pad(b2d, ((0, 0), (0, Np - N)))
            self.b2d = b2d
        else:
            self.b2d = None

    def __call__(self, x):
        assert x.shape[-1] == self.in_features
        return _linear_forward(
            x, self.wt, self.b2d,
            out_features=self.out_features,
            tm_cap=self.tm_cap, tn=self.tn, tk=self.tk,
        )


# --------------------------------------------------------------------------- #
# Demo / correctness checks
# --------------------------------------------------------------------------- #
if __name__ == "__main__":
    key = jax.random.PRNGKey(0)
    kx, kw, kb, kx2, kw2, kb2 = jax.random.split(key, 6)

    # --- (a) bias + single-K-tile (weight-resident) path --------------------
    batch, seq, hidden, out_features = 2, 8, 32, 64
    x = jax.random.normal(kx, (batch, seq, hidden), dtype=jnp.float32)
    weight = jax.random.normal(kw, (out_features, hidden), dtype=jnp.float32) * 0.02
    bias = jax.random.normal(kb, (out_features,), dtype=jnp.float32) * 0.02
    # TODO(synk): random_mask (rank) only gates gradients via a backward hook;
    # it has no forward-pass effect and is intentionally not modelled here.
    layer = RandomPruneLinear(weight, bias)
    out = jax.block_until_ready(layer(x))
    ref = jnp.einsum("bsk,nk->bsn", x, weight,
                     precision=lax.Precision.HIGHEST) + bias
    assert out.shape == (batch, seq, out_features)
    assert jnp.allclose(out, ref, atol=1e-4, rtol=1e-4)

    # --- (b) no-bias variant --------------------------------------------------
    layer_nb = RandomPruneLinear(weight, None)
    out_nb = jax.block_until_ready(layer_nb(x))
    ref_nb = jnp.einsum("bsk,nk->bsn", x, weight, precision=lax.Precision.HIGHEST)
    assert jnp.allclose(out_nb, ref_nb, atol=1e-4, rtol=1e-4)

    # --- (c) K-reduction (accumulator) path, forced via a small tk override --
    x2 = jax.random.normal(kx2, (2, 16, 384), dtype=jnp.float32)
    w2 = jax.random.normal(kw2, (256, 384), dtype=jnp.float32) * 0.02
    b2 = jax.random.normal(kb2, (256,), dtype=jnp.float32) * 0.02
    layer2 = RandomPruneLinear(w2, b2, tk=128)  # -> 3 K tiles
    out2 = jax.block_until_ready(layer2(x2))
    ref2 = jnp.einsum("bsk,nk->bsn", x2, w2,
                      precision=lax.Precision.HIGHEST) + b2
    assert out2.shape == (2, 16, 256)
    assert jnp.allclose(out2, ref2, atol=1e-4, rtol=1e-4)

    # --- (d) accumulator path without bias ------------------------------------
    layer3 = RandomPruneLinear(w2, None, tk=128)
    out3 = jax.block_until_ready(layer3(x2))
    ref3 = jnp.einsum("bsk,nk->bsn", x2, w2, precision=lax.Precision.HIGHEST)
    assert jnp.allclose(out3, ref3, atol=1e-4, rtol=1e-4)

    print("KERNEL_OK")
</pallas_src>

<mosaic_0001>
module attributes {stable_mosaic.version = 11 : i64} {
  func.func @_linear_bias_kernel(%arg0: i32, %arg1: i32, %arg2: memref<8x128xf32, #tpu.memory_space<vmem>>, %arg3: memref<128x128xf32, #tpu.memory_space<vmem>>, %arg4: memref<1x128xf32, #tpu.memory_space<vmem>>, %arg5: memref<8x128xf32, #tpu.memory_space<vmem>>) attributes {dimension_semantics = [#tpu.dimension_semantics<parallel>, #tpu.dimension_semantics<parallel>], iteration_bounds = array<i64: 2, 1>, scalar_prefetch = 0 : i64, scratch_operands = 0 : i64, tpu.core_type = #tpu.core_type<tc>, window_params = [{transform_indices = @transform_0, window_bounds = array<i64: 8, 128>}, {transform_indices = @transform_1, window_bounds = array<i64: 128, 128>}, {transform_indices = @transform_2, window_bounds = array<i64: 1, 128>}, {transform_indices = @transform_3, window_bounds = array<i64: 8, 128>}]} {
    %c0 = arith.constant 0 : index
    %c0_0 = arith.constant 0 : index
    %0 = vector.load %arg2[%c0, %c0_0] : memref<8x128xf32, #tpu.memory_space<vmem>>, vector<8x128xf32>
    %c0_1 = arith.constant 0 : index
    %c0_2 = arith.constant 0 : index
    %1 = vector.load %arg3[%c0_1, %c0_2] : memref<128x128xf32, #tpu.memory_space<vmem>>, vector<128x128xf32>
    %cst = arith.constant dense<0.000000e+00> : vector<8x128xf32>
    %2 = tpu.matmul %0, %1, %cst {dimension_numbers = #tpu.dot_dimension_numbers<[1], [0], [0], [1], [0, 0, 1, 1], [], []>} : vector<8x128xf32>, vector<128x128xf32>, vector<8x128xf32> -> vector<8x128xf32>
    %c0_3 = arith.constant 0 : index
    %c0_4 = arith.constant 0 : index
    %3 = vector.load %arg4[%c0_3, %c0_4] : memref<1x128xf32, #tpu.memory_space<vmem>>, vector<1x128xf32>
    %4 = vector.broadcast %3 : vector<1x128xf32> to vector<8x128xf32>
    %5 = arith.addf %2, %4 : vector<8x128xf32>
    %c0_5 = arith.constant 0 : index
    %c0_6 = arith.constant 0 : index
    %6 = vector.load %arg5[%c0_5, %c0_6] : memref<8x128xf32, #tpu.memory_space<vmem>>, vector<8x128xf32>
    tpu.vector_store %arg5[%c0_5, %c0_6], %5 {strides = array<i32>} : memref<8x128xf32, #tpu.memory_space<vmem>>, vector<8x128xf32>,
    return
  }
  func.func @transform_0(%arg0: i32, %arg1: i32) -> (i32, i32) {
    %c0_i32 = arith.constant 0 : i32
    %c0_i32_0 = arith.constant 0 : i32
    return %arg0, %c0_i32 : i32, i32
  }
  func.func @transform_1(%arg0: i32, %arg1: i32) -> (i32, i32) {
    %c0_i32 = arith.constant 0 : i32
    %c0_i32_0 = arith.constant 0 : i32
    return %c0_i32, %arg1 : i32, i32
  }
  func.func @transform_2(%arg0: i32, %arg1: i32) -> (i32, i32) {
    %c0_i32 = arith.constant 0 : i32
    %c0_i32_0 = arith.constant 0 : i32
    return %c0_i32, %arg1 : i32, i32
  }
  func.func @transform_3(%arg0: i32, %arg1: i32) -> (i32, i32) {
    %c0_i32 = arith.constant 0 : i32
    return %arg0, %arg1 : i32, i32
  }
}

</mosaic_0001>

<llo_original>
// kernel: _linear_forward.1
$region0: #{_linear_forward.1}
  #allocation0 [shape = 'u32[]', space=smem, size = 0x4, offset = 0x4, fixed_abs, tag = 'smem constant byte address 0x4 - core index']
  #allocation1 [shape = 'u32[144,128]{1,0:T(1,128)}', space=vmem, size = 0x12000, scoped, tag = 'internal scratch']
  %s0 = inlined_call_operand.vmem [shape: f32[16,128], index: 0, kind: input, shape index: {}]
  %s1 = inlined_call_operand.hbm [shape: f32[128,128], index: 1, kind: input, shape index: {}]
  %s2 = inlined_call_operand.vmem [shape: f32[1,128], index: 2, kind: input, shape index: {}]
  %s3 = inlined_call_operand.vmem [shape: f32[16,128], index: 3, kind: output, shape index: {}]
  %s4 = sld [smem:[#allocation0]]
  $region49: #{_linear_forward.1} parent=0
    _
  %s6 = ssub.s32 1, %s4
  %s7 = scalar_select 0, %s6, %s4
  $region1: #{_linear_forward.1} parent=0
    #allocation2 [shape = 'u8[65536]{0}', space=vmem, size = 0x10000, scoped, tag = 'input window, operand 1, single buffered']
    #allocation3 [shape = 's32[2]{0}', space=sflag, size = 0x8, scoped, tag = 'scoped memory for _linear_forward.1']
    %8 = vsyncpa [#allocation3], 0
    loop: start=0, step=1, limit=4
    $region2: #{_linear_forward.1} parent=1 // loop_pre_header
      _
    $region3: #{_linear_forward.1} parent=1 // loop_header
      %s10 = sphi 0, %s14
      %p11 = scmp.ge.s32.totalorder %s10, 4
      %s17 = sphi 0, %s29
      %s18 = sphi 0, %s25
      %s19 = sphi 0, %s17
      %s20 = sphi 0, %s18
      %s21 = sphi 0, %s19
      %s22 = sphi 0, %s20
      %s32 = sphi 0, %s34
      %s35 = sphi 0, %s32
      %s36 = sphi 0, %s35
      %s52 = sphi 0, %s36
      %s58 = sphi 0, %s60
      %s61 = sphi 0, %s58
      %s62 = sphi 0, %s61
      %s78 = sphi 0, %s62
      %s84 = sphi 0, %s86
      %s87 = sphi 0, %s84
      %s88 = sphi 0, %s87
      %s104 = sphi 0, %s88
      %s112 = sphi 0, %s114
      %s115 = sphi 0, %s112
      %s116 = sphi 0, %s115
      %s132 = sphi 0, %s116
    $region4: #{_linear_forward.1} parent=1 // loop_header_branch
      %13 = sbr.rel (%p11) target = $region8
    $region5: #{_linear_forward.1} parent=1 // loop_body
      %s15 = ssub.s32 %s10, 1
      %s16 = ssub.s32 %s10, 2
      %s23 = sadd.s32 1, %s18
      %p24 = scmp.ge.s32.totalorder %s23, 1
      %s25 = scalar_select %p24, 0, %s23
      %s26 = sadd.s32 1, %s17
      %s27 = scalar_select %p24, %s26, %s17
      %p28 = scmp.ge.s32.totalorder %s27, 2
      %s29 = scalar_select %p28, 0, %s27
      %s30 = ssub.s32 %s17, %s29
      %p31 = scmp.eq.s32.totalorder %s30, 0
      %s33 = sadd.s32 %s32, 1
      %s34 = scalar_select %p31, %s32, %s33
      %p37 = pneg %p31
      %p38 = scmp.eq.s32.totalorder %s10, 1
      %p39 = por %p37, %p38
      %p40 = scmp.ne.s32.totalorder %s32, %s35
      %p41 = scmp.eq.s32.totalorder %s10, 0
      %p42 = por %p40, %p41
      %p43 = scmp.ne.s32.totalorder %s32, %s35
      %p44 = scmp.eq.s32.totalorder %s15, 1
      %p45 = por %p43, %p44
      %p46 = scmp.ne.s32.totalorder %s35, %s36
      %p47 = scmp.eq.s32.totalorder %s15, 0
      %p48 = por %p46, %p47
      %p49 = scmp.ne.s32.totalorder %s35, %s36
      %p50 = scmp.eq.s32.totalorder %s16, 1
      %p51 = por %p49, %p50
      %p53 = scmp.ne.s32.totalorder %s36, %s52
      %p54 = scmp.eq.s32.totalorder %s16, 0
      %p55 = por %p53, %p54
      %s56 = ssub.s32 %s18, %s25
      %p57 = scmp.eq.s32.totalorder %s56, 0
      %s59 = sadd.s32 %s58, 1
      %s60 = scalar_select %p57, %s58, %s59
      %p63 = pneg %p57
      %p64 = scmp.eq.s32.totalorder %s10, 1
      %p65 = por %p63, %p64
      %p66 = scmp.ne.s32.totalorder %s58, %s61
      %p67 = scmp.eq.s32.totalorder %s10, 0
      %p68 = por %p66, %p67
      %p69 = scmp.ne.s32.totalorder %s58, %s61
      %p70 = scmp.eq.s32.totalorder %s15, 1
      %p71 = por %p69, %p70
      %p72 = scmp.ne.s32.totalorder %s61, %s62
      %p73 = scmp.eq.s32.totalorder %s15, 0
      %p74 = por %p72, %p73
      %p75 = scmp.ne.s32.totalorder %s61, %s62
      %p76 = scmp.eq.s32.totalorder %s16, 1
      %p77 = por %p75, %p76
      %p79 = scmp.ne.s32.totalorder %s62, %s78
      %p80 = scmp.eq.s32.totalorder %s16, 0
      %p81 = por %p79, %p80
      %s82 = ssub.s32 %s18, %s25
      %p83 = scmp.eq.s32.totalorder %s82, 0
      %s85 = sadd.s32 %s84, 1
      %s86 = scalar_select %p83, %s84, %s85
      %p89 = pneg %p83
      %p90 = scmp.eq.s32.totalorder %s10, 1
      %p91 = por %p89, %p90
      %p92 = scmp.ne.s32.totalorder %s84, %s87
      %p93 = scmp.eq.s32.totalorder %s10, 0
      %p94 = por %p92, %p93
      %p95 = scmp.ne.s32.totalorder %s84, %s87
      %p96 = scmp.eq.s32.totalorder %s15, 1
      %p97 = por %p95, %p96
      %p98 = scmp.ne.s32.totalorder %s87, %s88
      %p99 = scmp.eq.s32.totalorder %s15, 0
      %p100 = por %p98, %p99
      %p101 = scmp.ne.s32.totalorder %s87, %s88
      %p102 = scmp.eq.s32.totalorder %s16, 1
      %p103 = por %p101, %p102
      %p105 = scmp.ne.s32.totalorder %s88, %s104
      %p106 = scmp.eq.s32.totalorder %s16, 0
      %p107 = por %p105, %p106
      %s108 = ssub.s32 %s17, %s29
      %s109 = ssub.s32 %s18, %s25
      %s110 = sor.u32 %s108, %s109
      %p111 = scmp.eq.s32.totalorder %s110, 0
      %s113 = sadd.s32 %s112, 1
      %s114 = scalar_select %p111, %s112, %s113
      %p117 = pneg %p111
      %p118 = scmp.eq.s32.totalorder %s10, 1
      %p119 = por %p117, %p118
      %p120 = scmp.ne.s32.totalorder %s112, %s115
      %p121 = scmp.eq.s32.totalorder %s10, 0
      %p122 = por %p120, %p121
      %p123 = scmp.ne.s32.totalorder %s112, %s115
      %p124 = scmp.eq.s32.totalorder %s15, 1
      %p125 = por %p123, %p124
      %p126 = scmp.ne.s32.totalorder %s115, %s116
      %p127 = scmp.eq.s32.totalorder %s15, 0
      %p128 = por %p126, %p127
      %p129 = scmp.ne.s32.totalorder %s115, %s116
      %p130 = scmp.eq.s32.totalorder %s16, 1
      %p131 = por %p129, %p130
      %p133 = scmp.ne.s32.totalorder %s116, %s132
      %p134 = scmp.eq.s32.totalorder %s16, 0
      %p135 = por %p133, %p134
      %p136 = scmp.le.s32.totalorder 1, %s10
      %p137 = scmp.lt.s32.totalorder %s10, 3
      %p138 = pnand %p136, %p137
      %p139 = pneg %p138
      // Predicated region
      $region9: #{_linear_forward.1} parent=5 // pred_check
        _
      $region10: #{_linear_forward.1} parent=5 // pred_check_branch
        %141 = sbr.rel (%p138) target = $region12
      $region11: #{_linear_forward.1} parent=5 // pred_region
        %s142 = ssub.s32 %s10, 1
        // Predicated region
        $region13: #{_linear_forward.1} parent=11 // pred_check
          %p143 = pneg %p74
        $region14: #{_linear_forward.1} parent=11 // pred_check_branch
          %145 = sbr.rel (%p143) target = $region16
        $region15: #{_linear_forward.1} parent=11 // pred_region
          %s147 = ssub.s32 2048, 2048
          %148 = vsyncadd [#allocation3], %s147
          %s149 = smul.addr %s20, 128
          %s150 = scalar_lea.hbm %s1, %s149
          %s151 = sshll.u32 [#allocation2], 4
          %s152 = int_to_ptr.vmem [resolvable:$true] %s151
          %157 = dma.hbm_to_vmem [thread:$0]  %s150, 2048, %s152, [#allocation3], 128, 128, 8
        $region16: #{_linear_forward.1} parent=11 // pred_fallthru
          _
        // Predicated region
        $region17: #{_linear_forward.1} parent=11 // pred_check
          %p158 = pneg %p100
        $region18: #{_linear_forward.1} parent=11 // pred_check_branch
          %160 = sbr.rel (%p158) target = $region20
        $region19: #{_linear_forward.1} parent=11 // pred_region
          %p161 = scmp.lt.s32.totalorder %s20, 0
          %s162 = scalar_select %p161, %s20, 0
          %s163 = scalar_lea.vmem %s2, %s162
        $region20: #{_linear_forward.1} parent=11 // pred_fallthru
          _
      $region12: #{_linear_forward.1} parent=5 // pred_fallthru
        _
      %p164 = scmp.lt.s32.totalorder %s10, 2
      // Predicated region
      $region21: #{_linear_forward.1} parent=5 // pred_check
        %p165 = pneg %p164
      $region22: #{_linear_forward.1} parent=5 // pred_check_branch
        %167 = sbr.rel (%p165) target = $region24
      $region23: #{_linear_forward.1} parent=5 // pred_region
        // Predicated region
        $region25: #{_linear_forward.1} parent=23 // pred_check
          %p168 = pneg %p42
        $region26: #{_linear_forward.1} parent=23 // pred_check_branch
          %170 = sbr.rel (%p168) target = $region28
        $region27: #{_linear_forward.1} parent=23 // pred_region
          %p171 = scmp.lt.s32.totalorder %s17, 1
          %s172 = scalar_select %p171, %s17, 1
          %s173 = smul.addr %s172, 8
          %s174 = scalar_lea.vmem %s0, %s173
        $region28: #{_linear_forward.1} parent=23 // pred_fallthru
          _
      $region24: #{_linear_forward.1} parent=5 // pred_fallthru
        _
      %p175 = scmp.le.s32.totalorder 1, %s10
      %p176 = scmp.lt.s32.totalorder %s10, 3
      %p177 = pnand %p175, %p176
      %p178 = pneg %p177
      // Predicated region
      $region29: #{_linear_forward.1} parent=5 // pred_check
        _
      $region30: #{_linear_forward.1} parent=5 // pred_check_branch
        %180 = sbr.rel (%p177) target = $region32
      $region31: #{_linear_forward.1} parent=5 // pred_region
        %s181 = ssub.s32 %s10, 1
        // Predicated region
        $region33: #{_linear_forward.1} parent=31 // pred_check
          %p182 = pneg %p74
        $region34: #{_linear_forward.1} parent=31 // pred_check_branch
          %184 = sbr.rel (%p182) target = $region36
        $region35: #{_linear_forward.1} parent=31 // pred_region
          %185 = dma.done [#allocation3], 2048
        $region36: #{_linear_forward.1} parent=31 // pred_fallthru
          _
        %p186 = scmp.lt.s32.totalorder %s19, 1
        %s187 = scalar_select %p186, %s19, 1
        %s188 = smul.addr %s187, 8
        %s189 = scalar_lea.vmem %s0, %s188
        %p190 = pneg %p48
        %p191 = pneg %p45
        %p192 = pneg %p74
        %p193 = pneg %p71
        %p194 = scmp.lt.s32.totalorder %s20, 0
        %s195 = scalar_select %p194, %s20, 0
        %s196 = scalar_lea.vmem %s2, %s195
        %p197 = pneg %p100
        %p198 = pneg %p97
        %p199 = pneg %p128
        %p200 = pneg %p125
        %p201 = scmp.lt.s32.totalorder %s19, 1
        %s202 = scalar_select %p201, %s19, 1
        %p203 = scmp.lt.s32.totalorder %s20, 0
        %s204 = scalar_select %p203, %s20, 0
        %s205 = sadd.s32 %s204, %s202
        %s206 = smul.addr %s205, 8
        %s207 = scalar_lea.vmem %s3, %s206
        %p208 = scmp.lt.s32.totalorder %s19, 1
        %s209 = scalar_select %p208, %s19, 1
        %s210 = smul.addr %s209, 8
        %s211 = scalar_lea.vmem %s0, %s210
        %p212 = scmp.lt.s32.totalorder %s20, 0
        %s213 = scalar_select %p212, %s20, 0
        %s214 = scalar_lea.vmem %s2, %s213
        %p215 = scmp.lt.s32.totalorder %s19, 1
        %s216 = scalar_select %p215, %s19, 1
        %p217 = scmp.lt.s32.totalorder %s20, 0
        %s218 = scalar_select %p217, %s20, 0
        %s219 = sadd.s32 %s218, %s216
        %s220 = smul.addr %s219, 8
        %s221 = scalar_lea.vmem %s3, %s220
        %v222 = vld [vmem:[%s211] sm:$0xff]
        %v223 = vld [vmem:[#allocation2] sm:$0xff]
        %v224 = vld [vmem:[#allocation2 + $0x8] sm:$0xff]
        %v225 = vld [vmem:[#allocation2 + $0x10] sm:$0xff]
        %v226 = vld [vmem:[#allocation2 + $0x18] sm:$0xff]
        %v227 = vld [vmem:[#allocation2 + $0x20] sm:$0xff]
        %v228 = vld [vmem:[#allocation2 + $0x28] sm:$0xff]
        %v229 = vld [vmem:[#allocation2 + $0x30] sm:$0xff]
        %v230 = vld [vmem:[#allocation2 + $0x38] sm:$0xff]
        %v231 = vld [vmem:[#allocation2 + $0x40] sm:$0xff]
        %v232 = vld [vmem:[#allocation2 + $0x48] sm:$0xff]
        %v233 = vld [vmem:[#allocation2 + $0x50] sm:$0xff]
        %v234 = vld [vmem:[#allocation2 + $0x58] sm:$0xff]
        %v235 = vld [vmem:[#allocation2 + $0x60] sm:$0xff]
        %v236 = vld [vmem:[#allocation2 + $0x68] sm:$0xff]
        %v237 = vld [vmem:[#allocation2 + $0x70] sm:$0xff]
        %v238 = vld [vmem:[#allocation2 + $0x78] sm:$0xff]
        %v239 = vld [vmem:[%s214] sm:$0x1]
        %v241 = vlaneseq
        %v242 = vshrl.u32 %v241, 7
        %v243 = vsub.s32 0, %v242
        %v244 = vrot.slane %v239, %v243
        %246 = vmatprep.subr.mxu0 0.0
        %247 = vmatpush1.msra.mxu0 %v238
        %248 = vmatprep.subr.mxu0 0.0
        %249 = vmatpush1.msra.mxu0 %v237
        %250 = vmatprep.subr.mxu0 0.0
        %251 = vmatpush1.msra.mxu0 %v236
        %252 = vmatprep.subr.mxu0 0.0
        %253 = vmatpush1.msra.mxu0 %v235
        %254 = vmatprep.subr.mxu0 0.0
        %255 = vmatpush1.msra.mxu0 %v234
        %256 = vmatprep.subr.mxu0 0.0
        %257 = vmatpush1.msra.mxu0 %v233
        %258 = vmatprep.subr.mxu0 0.0
        %259 = vmatpush1.msra.mxu0 %v232
        %260 = vmatprep.subr.mxu0 0.0
        %261 = vmatpush1.msra.mxu0 %v231
        %262 = vmatprep.subr.mxu0 0.0
        %263 = vmatpush1.msra.mxu0 %v230
        %264 = vmatprep.subr.mxu0 0.0
        %265 = vmatpush1.msra.mxu0 %v229
        %266 = vmatprep.subr.mxu0 0.0
        %267 = vmatpush1.msra.mxu0 %v228
        %268 = vmatprep.subr.mxu0 0.0
        %269 = vmatpush1.msra.mxu0 %v227
        %270 = vmatprep.subr.mxu0 0.0
        %271 = vmatpush1.msra.mxu0 %v226
        %272 = vmatprep.subr.mxu0 0.0
        %273 = vmatpush1.msra.mxu0 %v225
        %274 = vmatprep.subr.mxu0 0.0
        %275 = vmatpush1.msra.mxu0 %v224
        %276 = vmatprep.subr.mxu0 0.0
        %277 = vmatpush1.msra.mxu0 %v223
        %278 = vmatprep.subr.mxu0 0.0
        %279 = vmatpush2.msra.mxu0 0.0
        %280 = vmatprep.subr.mxu0 0.0
        %281 = vmatpush2.msra.mxu0 0.0
        %282 = vmatprep.subr.mxu0 0.0
        %283 = vmatpush2.msra.mxu0 0.0
        %284 = vmatprep.subr.mxu0 0.0
        %285 = vmatpush2.msra.mxu0 0.0
        %286 = vmatprep.subr.mxu0 0.0
        %287 = vmatpush2.msra.mxu0 0.0
        %288 = vmatprep.subr.mxu0 0.0
        %289 = vmatpush2.msra.mxu0 0.0
        %290 = vmatprep.subr.mxu0 0.0
        %291 = vmatpush2.msra.mxu0 0.0
        %292 = vmatprep.subr.mxu0 0.0
        %293 = vmatpush2.msra.mxu0 0.0
        %294 = vmatprep.subr.mxu0 0.0
        %295 = vmatpush2.msra.mxu0 0.0
        %296 = vmatprep.subr.mxu0 0.0
        %297 = vmatpush2.msra.mxu0 0.0
        %298 = vmatprep.subr.mxu0 0.0
        %299 = vmatpush2.msra.mxu0 0.0
        %300 = vmatprep.subr.mxu0 0.0
        %301 = vmatpush2.msra.mxu0 0.0
        %302 = vmatprep.subr.mxu0 0.0
        %303 = vmatpush2.msra.mxu0 0.0
        %304 = vmatprep.subr.mxu0 0.0
        %305 = vmatpush2.msra.mxu0 0.0
        %306 = vmatprep.subr.mxu0 0.0
        %307 = vmatpush2.msra.mxu0 0.0
        %308 = vmatprep.subr.mxu0 0.0
        %309 = vmatpush2.msra.mxu0 0.0
        %310 = vmatprep.mubr.f32.mxu0 0.0
        %311 = vmatmul.mubr.f32.gmra.mxu0 %v222
        %v312 = vpop.f32.mrf.mxu0
        %v313 = vadd.f32 %v244, %v312
        %v314 = vpop.f32.mrf.mxu0
        %315 = vdwg.mxu0
        %316 = vst [vmem:[%s221] sm:$0xff] %v313
        %p317 = scmp.lt.s32.totalorder %s19, 1
        %s318 = scalar_select %p317, %s19, 1
        %p319 = scmp.lt.s32.totalorder %s20, 0
        %s320 = scalar_select %p319, %s20, 0
        %s321 = sadd.s32 %s320, %s318
        %s322 = smul.addr %s321, 8
        %s323 = scalar_lea.vmem %s3, %s322
        // Predicated region
        $region37: #{_linear_forward.1} parent=31 // pred_check
          %p324 = pneg %p125
        $region38: #{_linear_forward.1} parent=31 // pred_check_branch
          %326 = sbr.rel (%p324) target = $region40
        $region39: #{_linear_forward.1} parent=31 // pred_region
          _
        $region40: #{_linear_forward.1} parent=31 // pred_fallthru
          _
      $region32: #{_linear_forward.1} parent=5 // pred_fallthru
        _
      %p327 = scmp.le.s32.totalorder 2, %s10
      // Predicated region
      $region41: #{_linear_forward.1} parent=5 // pred_check
        %p328 = pneg %p327
      $region42: #{_linear_forward.1} parent=5 // pred_check_branch
        %330 = sbr.rel (%p328) target = $region44
      $region43: #{_linear_forward.1} parent=5 // pred_region
        %s331 = ssub.s32 %s10, 2
        // Predicated region
        $region45: #{_linear_forward.1} parent=43 // pred_check
          %p332 = pneg %p131
        $region46: #{_linear_forward.1} parent=43 // pred_check_branch
          %334 = sbr.rel (%p332) target = $region48
        $region47: #{_linear_forward.1} parent=43 // pred_region
          %p335 = scmp.lt.s32.totalorder %s21, 1
          %s336 = scalar_select %p335, %s21, 1
          %p337 = scmp.lt.s32.totalorder %s22, 0
          %s338 = scalar_select %p337, %s22, 0
          %s339 = sadd.s32 %s338, %s336
          %s340 = smul.addr %s339, 8
          %s341 = scalar_lea.vmem %s3, %s340
        $region48: #{_linear_forward.1} parent=43 // pred_fallthru
          _
      $region44: #{_linear_forward.1} parent=5 // pred_fallthru
        _
    $region6: #{_linear_forward.1} parent=1 // loop_footer
      %s14 = sadd.s32 1, %s10
    $region7: #{_linear_forward.1} parent=1 // loop_footer_branch
      %9 = sbr.rel target = $region3
    $region8: #{_linear_forward.1} parent=1 // loop_exit
      _
    %342 = vsyncpa [#allocation3], 1
    %s343 = scalar_lea.sflag [#allocation3], 1
    %344 = vsyncpa %s343, 1

</llo_original>
